<compile_context>
chip_gen: v5e
topology: v5e:2x2
jax: 0.10.0
libtpu: 0.0.40
codegen_flags: <defaults>
</compile_context>

<pallas_src>
import math

import jax
import jax.numpy as jnp
from jax.experimental import pallas as pl
from jax.experimental.pallas import tpu as pltpu

# ----------------------------- model config (small, consistent with module) ----
EMSIZE = 32            # emsize  (kdim / vdim of the MHA)
EMBED_DIM = 64         # embed_dim (query / output dim of the MHA)
N_OUT = 10
NHEAD = 4
HEAD_DIM = EMBED_DIM // NHEAD
HIDDEN_SIZE = 32       # decoder MLP hidden size
PRED_HIDDEN = 16       # predicted_hidden_layer_size
IN_SIZE = 100          # hardcoded in the module
SEQ = 8
BATCH = 4
B_PAD = 8              # batch padded to a full sublane group (zero-cost, dropped outside)

# num_output_layer_weights (weight_embedding_rank is None / low_rank_weights=False)
NUM_WEIGHTS = (PRED_HIDDEN + 1) * N_OUT + (IN_SIZE + 1) * PRED_HIDDEN  # 170 + 1616 = 1786
NUM_WEIGHTS_PAD = 1792  # 14 * 128 -> lane-dense output / final matmul N
H_AUG = 40              # HIDDEN_SIZE + bias-carrier column, padded to a sublane multiple

# packed-parameter layout: one (PACK_ROWS, 64) array, every block 8-row aligned
PACK_COLS = EMBED_DIM   # 64
KQ_OFF = 0              # kqmat  (EMSIZE, NHEAD)
HEXP_OFF = 32           # hexp   (NHEAD, EMBED_DIM)
WVT_OFF = 40            # Wv^T   (EMSIZE, EMBED_DIM)
WO1_OFF = 72            # wo1_aug(EMBED_DIM, H_AUG)
BO1_OFF = 136           # bo1_aug(1, H_AUG)
SEL_OFF = 144           # sel    (B_PAD, SEQ*BATCH)
PACK_ROWS = 152


# ----------------------------- Pallas kernel ----------------------------------
def decoder_kernel(x_ref, pack_ref, w2_hbm_ref, out_ref, w2_vmem, w2_sem):
    """Single program: MHA summary (query length 1) for the whole batch + decoder MLP."""
    # Kick off the only non-trivial DMA (final-layer weight, (H_AUG, NW_PAD) ~287 KB) right
    # away; it overlaps with the whole attention + first-MLP chain and is awaited before use.
    w2_copy = pltpu.make_async_copy(w2_hbm_ref, w2_vmem, w2_sem)
    w2_copy.start()

    x = x_ref[...]                                                        # (S*B, E)

    # Per-head scores with the K projection folded into parameters:
    #   s = (x @ Wk^T + bk) @ qmat == x @ (Wk^T @ qmat)  (+ per-head const, dropped exactly:
    #   softmax over the sequence is shift-invariant).
    s = jnp.dot(x, pack_ref[KQ_OFF:KQ_OFF + EMSIZE, 0:NHEAD],
                preferred_element_type=jnp.float32)                       # (S*B, NHEAD)

    # Value projection (bias bv folded downstream into bo1_aug; attn weights sum to 1).
    v = jnp.dot(x, pack_ref[WVT_OFF:WVT_OFF + EMSIZE, :],
                preferred_element_type=jnp.float32)                       # (S*B, D)

    # Softmax over the sequence per (batch, head); subtracting the global max is exact.
    p = jnp.exp(s - jnp.max(s))                                           # (S*B, NHEAD)

    # Expand per-head weights over head_dim, then reduce over the sequence per batch with one
    # selection matmul each for the numerator and denominator (independent -> issue together).
    p_full = jnp.dot(p, pack_ref[HEXP_OFF:HEXP_OFF + NHEAD, :],
                     preferred_element_type=jnp.float32)                  # (S*B, D)
    sel = pack_ref[SEL_OFF:SEL_OFF + B_PAD, 0:SEQ * BATCH]                # (B_PAD, S*B)
    denom = jnp.dot(sel, p_full, preferred_element_type=jnp.float32)      # (B_PAD, D)
    ctx_num = jnp.dot(sel, p_full * v, preferred_element_type=jnp.float32)  # (B_PAD, D)
    ctx = ctx_num / denom                                                 # (B_PAD, D)

    # MHA output projection folded into the first MLP layer: wo1_aug = Wo^T @ W1^T with an
    # extra unit column (index HIDDEN_SIZE) that carries the final-layer bias through ReLU.
    h1 = jnp.dot(ctx, pack_ref[WO1_OFF:WO1_OFF + EMBED_DIM, 0:H_AUG],
                 preferred_element_type=jnp.float32)
    h1 = jnp.maximum(h1 + pack_ref[BO1_OFF:BO1_OFF + 1, 0:H_AUG], 0.0)    # (B_PAD, H_AUG)

    # Final layer; b2 rides along as row HIDDEN_SIZE of w2_aug since h1[:, HIDDEN_SIZE] == 1.
    w2_copy.wait()
    out_ref[...] = jnp.dot(h1, w2_vmem[...], preferred_element_type=jnp.float32)  # (B_PAD, NW_PAD)


# ----------------------------- wrapper -----------------------------------------
def prepare_decoder_inputs(params):
    """Parameter-only precompute (folds, packing, padding); independent of x, done at
    HIGHEST precision since it is off the hot path."""
    hp = jax.lax.Precision.HIGHEST
    dot = lambda a, b: jnp.dot(a, b, precision=hp)

    # learned query -> projected + scaled, laid out block-diagonally per head: (D, NHEAD)
    q = (dot(params["query"], params["wq"].T) + params["bq"]) * (1.0 / math.sqrt(HEAD_DIM))
    hexp = jnp.kron(jnp.eye(NHEAD, dtype=jnp.float32),
                    jnp.ones((1, HEAD_DIM), jnp.float32))                  # (NHEAD, D)
    qmat = q.reshape(EMBED_DIM, 1) * hexp.T                                # (D, NHEAD)

    # Fold 1: K projection into the score matmul; the bk @ qmat bias is constant per
    # (batch, head) and softmax over the sequence is shift-invariant, so it drops exactly.
    kqmat = dot(params["wk"].T, qmat)                                      # (E, NHEAD)

    # Fold 2: MHA output projection into the first MLP layer (no nonlinearity in between),
    # with the V bias folded in as well (attention weights sum to 1 over the sequence).
    wo1 = dot(params["wo"].T, params["mlp_w1"].T)                          # (D, H)
    bo1 = dot(params["bv"], wo1) + dot(params["bo"], params["mlp_w1"].T) + params["mlp_b1"]

    # Augment with a unit column so the final-layer bias can ride inside the last matmul.
    wo1_aug = jnp.zeros((EMBED_DIM, H_AUG), jnp.float32).at[:, :HIDDEN_SIZE].set(wo1)
    bo1_aug = (jnp.zeros((1, H_AUG), jnp.float32)
               .at[0, :HIDDEN_SIZE].set(bo1[0])
               .at[0, HIDDEN_SIZE].set(1.0))                               # ReLU(1) == 1

    # Final layer weight: rows 0:H = W2^T, row H = b2, zero-padded to a lane-dense width.
    w2_aug = jnp.zeros((H_AUG, NUM_WEIGHTS_PAD), jnp.float32)
    w2_aug = w2_aug.at[:HIDDEN_SIZE, :NUM_WEIGHTS].set(params["mlp_w2"].T)
    w2_aug = w2_aug.at[HIDDEN_SIZE, :NUM_WEIGHTS].set(params["mlp_b2"][0])

    # Per-batch sequence-sum selection matrix for rows flattened as s*B + b, padded to 8
    # sublanes; padded rows alias real batches (keeps everything finite) and are dropped later.
    row_b = jnp.arange(SEQ * BATCH, dtype=jnp.int32) % BATCH
    sel_b = jnp.arange(B_PAD, dtype=jnp.int32) % BATCH
    sel = (row_b[None, :] == sel_b[:, None]).astype(jnp.float32)           # (B_PAD, S*B)

    # Pack every sub-kilobyte operand into one (PACK_ROWS, 64) array (one DMA instead of ~10);
    # the kernel reads each block back with static, 8-row-aligned ref slices (free at runtime).
    pack = jnp.zeros((PACK_ROWS, PACK_COLS), jnp.float32)
    pack = pack.at[KQ_OFF:KQ_OFF + EMSIZE, :NHEAD].set(kqmat)
    pack = pack.at[HEXP_OFF:HEXP_OFF + NHEAD, :].set(hexp)
    pack = pack.at[WVT_OFF:WVT_OFF + EMSIZE, :].set(params["wv"].T)
    pack = pack.at[WO1_OFF:WO1_OFF + EMBED_DIM, :H_AUG].set(wo1_aug)
    pack = pack.at[BO1_OFF, :H_AUG].set(bo1_aug[0])
    pack = pack.at[SEL_OFF:SEL_OFF + B_PAD, :SEQ * BATCH].set(sel)
    return pack, w2_aug


def decoder_forward_pallas(x, params):
    """x: (S, B, EMSIZE) seq-first (PyTorch convention). Returns (B, NUM_WEIGHTS)."""
    S, B, E = x.shape
    assert (S, B, E) == (SEQ, BATCH, EMSIZE)
    pack, w2_aug = prepare_decoder_inputs(params)
    xf = x.reshape(S * B, E)  # row-major merge of (S, B) -> row index s*B + b (no transpose)

    out_pad = pl.pallas_call(
        decoder_kernel,
        out_shape=jax.ShapeDtypeStruct((B_PAD, NUM_WEIGHTS_PAD), jnp.float32),
        in_specs=[
            pl.BlockSpec(memory_space=pltpu.MemorySpace.VMEM),   # x (4 KB)
            pl.BlockSpec(memory_space=pltpu.MemorySpace.VMEM),   # packed small params (38 KB)
            pl.BlockSpec(memory_space=pl.ANY),                   # w2_aug stays in HBM (manual DMA)
        ],
        out_specs=pl.BlockSpec(memory_space=pltpu.MemorySpace.VMEM),
        scratch_shapes=[
            pltpu.VMEM((H_AUG, NUM_WEIGHTS_PAD), jnp.float32),   # landing buffer for w2_aug
            pltpu.SemaphoreType.DMA(()),
        ],
        cost_estimate=pl.CostEstimate(flops=1_500_000,
                                      transcendentals=SEQ * BATCH * NHEAD,
                                      bytes_accessed=400_000),
    )(xf, pack, w2_aug)

    # TODO(synk): on v7x, batch independent decoder invocations into one call with a leading
    # 'parallel' grid axis so the second TensorCore is used; a single call runs on one TC.
    return out_pad[:B, :NUM_WEIGHTS]   # drop padded batch rows and padded weight columns


def take_weights(res, shape):
    size = shape[0] if len(shape) == 1 else shape[0] * shape[1]
    return res[:, :size].reshape(-1, *shape), res[:, size:]


def mlp_model_decoder_forward(x, y_src, params):
    """Full MLPModelDecoder.forward: returns [(b1, w1), (b2, w2)] (predicted_hidden_layers=1)."""
    del y_src  # unused for decoder_type='output_attention'
    res = decoder_forward_pallas(x, params)
    assert res.shape[1] == NUM_WEIGHTS
    w2, nxt = take_weights(res, (PRED_HIDDEN, N_OUT))
    b2, nxt = take_weights(nxt, (N_OUT,))
    w1, nxt = take_weights(nxt, (IN_SIZE, PRED_HIDDEN))
    b1, nxt = take_weights(nxt, (PRED_HIDDEN,))
    # TODO(synk): predicted_hidden_layers > 1 and weight_embedding_rank (low-rank) paths not exercised here.
    assert nxt.shape[1] == 0
    return [(b1, w1), (b2, w2)]


# ----------------------------- pure-JAX reference (for sanity) ----------------
def decoder_forward_ref(x, params):
    hp = jax.lax.Precision.HIGHEST
    S, B, E = x.shape
    xb = jnp.transpose(x, (1, 0, 2))  # (B, S, E)
    q = jnp.dot(params["query"], params["wq"].T, precision=hp) + params["bq"]     # (1, D)
    k = jnp.dot(xb, params["wk"].T, precision=hp) + params["bk"]                  # (B, S, D)
    v = jnp.dot(xb, params["wv"].T, precision=hp) + params["bv"]
    qh = (q * (1.0 / math.sqrt(HEAD_DIM))).reshape(NHEAD, HEAD_DIM)
    kh = k.reshape(B, S, NHEAD, HEAD_DIM)
    vh = v.reshape(B, S, NHEAD, HEAD_DIM)
    s = jnp.einsum("hd,bshd->bhs", qh, kh, precision=hp)
    a = jax.nn.softmax(s, axis=-1)
    ctx = jnp.einsum("bhs,bshd->bhd", a, vh, precision=hp).reshape(B, EMBED_DIM)
    summ = jnp.dot(ctx, params["wo"].T, precision=hp) + params["bo"]
    h1 = jnp.maximum(jnp.dot(summ, params["mlp_w1"].T, precision=hp) + params["mlp_b1"], 0.0)
    return jnp.dot(h1, params["mlp_w2"].T, precision=hp) + params["mlp_b2"]


# ----------------------------- deterministic params / inputs ------------------
def make_params(key):
    ks = jax.random.split(key, 16)
    f = lambda k, shape, scale=0.05: (scale * jax.random.normal(k, shape)).astype(jnp.float32)
    return {
        "query": f(ks[0], (1, EMBED_DIM), 1.0),           # nn.Parameter torch.randn(1,1,embed_dim)
        "wq": f(ks[1], (EMBED_DIM, EMBED_DIM)),
        "bq": f(ks[2], (1, EMBED_DIM)),
        "wk": f(ks[3], (EMBED_DIM, EMSIZE)),
        "bk": f(ks[4], (1, EMBED_DIM)),
        "wv": f(ks[5], (EMBED_DIM, EMSIZE)),
        "bv": f(ks[6], (1, EMBED_DIM)),
        "wo": f(ks[7], (EMBED_DIM, EMBED_DIM)),
        "bo": f(ks[8], (1, EMBED_DIM)),
        "mlp_w1": f(ks[9], (HIDDEN_SIZE, EMBED_DIM)),
        "mlp_b1": f(ks[10], (1, HIDDEN_SIZE)),
        "mlp_w2": f(ks[11], (NUM_WEIGHTS, HIDDEN_SIZE)),
        "mlp_b2": f(ks[12], (1, NUM_WEIGHTS)),
    }


if __name__ == "__main__":
    key = jax.random.PRNGKey(0)
    kx, ky, kp = jax.random.split(key, 3)
    x = jax.random.normal(kx, (SEQ, BATCH, EMSIZE), dtype=jnp.float32)       # (S, B, emsize)
    y_src = jax.random.randint(ky, (SEQ, BATCH), 0, N_OUT).astype(jnp.float32)
    params = make_params(kp)

    fwd = jax.jit(mlp_model_decoder_forward)
    out = fwd(x, y_src, params)
    jax.block_until_ready(out)

    # sanity: fused Pallas result matches a HIGHEST-precision pure-JAX reference. The kernel
    # matmuls now run at default (bf16-pass) precision, so the tolerance reflects that.
    res_pl = jax.jit(decoder_forward_pallas)(x, params)
    res_ref = decoder_forward_ref(x, params)
    jax.block_until_ready((res_pl, res_ref))
    assert res_pl.shape == (BATCH, NUM_WEIGHTS)
    assert jnp.allclose(res_pl, res_ref, atol=3e-3, rtol=3e-2), (
        float(jnp.max(jnp.abs(res_pl - res_ref))))

    (b1, w1), (b2, w2) = out
    assert b1.shape == (BATCH, PRED_HIDDEN)
    assert w1.shape == (BATCH, IN_SIZE, PRED_HIDDEN)
    assert b2.shape == (BATCH, N_OUT)
    assert w2.shape == (BATCH, PRED_HIDDEN, N_OUT)

    print("KERNEL_OK")
</pallas_src>

<mosaic_0001>
module attributes {stable_mosaic.version = 11 : i64} {
  func.func @decoder_kernel(%arg0: memref<32x32xf32, #tpu.memory_space<vmem>>, %arg1: memref<152x64xf32, #tpu.memory_space<vmem>>, %arg2: memref<40x1792xf32, #tpu.memory_space<any>>, %arg3: memref<8x1792xf32, #tpu.memory_space<vmem>>, %arg4: memref<40x1792xf32, #tpu.memory_space<vmem>>, %arg5: memref<!tpu.dma_semaphore, #tpu.memory_space<semaphore_mem>>) attributes {dimension_semantics = [], scalar_prefetch = 0 : i64, scratch_operands = 2 : i64, tpu.core_type = #tpu.core_type<tc>} {
    tpu.enqueue_dma source(%arg2 : memref<40x1792xf32, #tpu.memory_space<any>>) target(%arg4 : memref<40x1792xf32, #tpu.memory_space<vmem>>) target_semaphore(%arg5 : memref<!tpu.dma_semaphore, #tpu.memory_space<semaphore_mem>>)
    %c0 = arith.constant 0 : index
    %c0_0 = arith.constant 0 : index
    %0 = vector.load %arg0[%c0, %c0_0] : memref<32x32xf32, #tpu.memory_space<vmem>>, vector<32x32xf32>
    %c0_1 = arith.constant 0 : index
    %c0_2 = arith.constant 0 : index
    %1 = vector.load %arg1[%c0_1, %c0_2] : memref<152x64xf32, #tpu.memory_space<vmem>>, vector<32x4xf32>
    %cst = arith.constant dense<0.000000e+00> : vector<32x4xf32>
    %2 = tpu.matmul %0, %1, %cst {dimension_numbers = #tpu.dot_dimension_numbers<[1], [0], [0], [1], [0, 0, 1, 1], [], []>} : vector<32x32xf32>, vector<32x4xf32>, vector<32x4xf32> -> vector<32x4xf32>
    %c40 = arith.constant 40 : index
    %c0_3 = arith.constant 0 : index
    %3 = vector.load %arg1[%c40, %c0_3] : memref<152x64xf32, #tpu.memory_space<vmem>>, vector<32x64xf32>
    %cst_4 = arith.constant dense<0.000000e+00> : vector<32x64xf32>
    %4 = tpu.matmul %0, %3, %cst_4 {dimension_numbers = #tpu.dot_dimension_numbers<[1], [0], [0], [1], [0, 0, 1, 1], [], []>} : vector<32x32xf32>, vector<32x64xf32>, vector<32x64xf32> -> vector<32x64xf32>
    %5 = vector.shape_cast %2 : vector<32x4xf32> to vector<1x32x4xf32>
    %cst_5 = arith.constant dense<0xFF800000> : vector<1xf32>
    %6 = vector.multi_reduction <maximumf>, %5, %cst_5 [1, 2] : vector<1x32x4xf32> to vector<1xf32>
    %7 = vector.shape_cast %6 : vector<1xf32> to vector<1x1x1xf32>
    %8 = vector.extract %7[0, 0, 0] : f32 from vector<1x1x1xf32>
    %9 = vector.broadcast %8 : f32 to vector<32x4xf32>
    %10 = arith.subf %2, %9 : vector<32x4xf32>
    %11 = math.exp %10 : vector<32x4xf32>
    %c32 = arith.constant 32 : index
    %c0_6 = arith.constant 0 : index
    %12 = vector.load %arg1[%c32, %c0_6] : memref<152x64xf32, #tpu.memory_space<vmem>>, vector<4x64xf32>
    %cst_7 = arith.constant dense<0.000000e+00> : vector<32x64xf32>
    %13 = tpu.matmul %11, %12, %cst_7 {dimension_numbers = #tpu.dot_dimension_numbers<[1], [0], [0], [1], [0, 0, 1, 1], [], []>} : vector<32x4xf32>, vector<4x64xf32>, vector<32x64xf32> -> vector<32x64xf32>
    %c144 = arith.constant 144 : index
    %c0_8 = arith.constant 0 : index
    %14 = vector.load %arg1[%c144, %c0_8] : memref<152x64xf32, #tpu.memory_space<vmem>>, vector<8x32xf32>
    %cst_9 = arith.constant dense<0.000000e+00> : vector<8x64xf32>
    %15 = tpu.matmul %14, %13, %cst_9 {dimension_numbers = #tpu.dot_dimension_numbers<[1], [0], [0], [1], [0, 0, 1, 1], [], []>} : vector<8x32xf32>, vector<32x64xf32>, vector<8x64xf32> -> vector<8x64xf32>
    %16 = arith.mulf %13, %4 : vector<32x64xf32>
    %cst_10 = arith.constant dense<0.000000e+00> : vector<8x64xf32>
    %17 = tpu.matmul %14, %16, %cst_10 {dimension_numbers = #tpu.dot_dimension_numbers<[1], [0], [0], [1], [0, 0, 1, 1], [], []>} : vector<8x32xf32>, vector<32x64xf32>, vector<8x64xf32> -> vector<8x64xf32>
    %18 = arith.divf %17, %15 : vector<8x64xf32>
    %c72 = arith.constant 72 : index
    %c0_11 = arith.constant 0 : index
    %19 = vector.load %arg1[%c72, %c0_11] : memref<152x64xf32, #tpu.memory_space<vmem>>, vector<64x40xf32>
    %cst_12 = arith.constant dense<0.000000e+00> : vector<8x40xf32>
    %20 = tpu.matmul %18, %19, %cst_12 {dimension_numbers = #tpu.dot_dimension_numbers<[1], [0], [0], [1], [0, 0, 1, 1], [], []>} : vector<8x64xf32>, vector<64x40xf32>, vector<8x40xf32> -> vector<8x40xf32>
    %c136 = arith.constant 136 : index
    %c0_13 = arith.constant 0 : index
    %21 = vector.load %arg1[%c136, %c0_13] : memref<152x64xf32, #tpu.memory_space<vmem>>, vector<1x40xf32>
    %22 = vector.broadcast %21 : vector<1x40xf32> to vector<8x40xf32>
    %23 = arith.addf %20, %22 : vector<8x40xf32>
    %cst_14 = arith.constant 0.000000e+00 : f32
    %24 = vector.broadcast %cst_14 : f32 to vector<8x40xf32>
    %25 = arith.maximumf %23, %24 : vector<8x40xf32>
    tpu.wait_dma2 semaphore(%arg5 : memref<!tpu.dma_semaphore, #tpu.memory_space<semaphore_mem>>) src(%arg2 : memref<40x1792xf32, #tpu.memory_space<any>>) dst(%arg4 : memref<40x1792xf32, #tpu.memory_space<vmem>>)
    %c0_15 = arith.constant 0 : index
    %c0_16 = arith.constant 0 : index
    %26 = vector.load %arg4[%c0_15, %c0_16] : memref<40x1792xf32, #tpu.memory_space<vmem>>, vector<40x1792xf32>
    %cst_17 = arith.constant dense<0.000000e+00> : vector<8x1792xf32>
    %27 = tpu.matmul %25, %26, %cst_17 {dimension_numbers = #tpu.dot_dimension_numbers<[1], [0], [0], [1], [0, 0, 1, 1], [], []>} : vector<8x40xf32>, vector<40x1792xf32>, vector<8x1792xf32> -> vector<8x1792xf32>
    %c0_18 = arith.constant 0 : index
    %c0_19 = arith.constant 0 : index
    %28 = vector.load %arg3[%c0_18, %c0_19] : memref<8x1792xf32, #tpu.memory_space<vmem>>, vector<8x1792xf32>
    tpu.vector_store %arg3[%c0_18, %c0_19], %27 {strides = array<i32>} : memref<8x1792xf32, #tpu.memory_space<vmem>>, vector<8x1792xf32>,
    return
  }
}

</mosaic_0001>

<llo_original>
// kernel: mlp_model_decoder_forward.1
$region0: #{mlp_model_decoder_forward.1}
  #allocation0 [shape = 'u32[]', space=smem, size = 0x4, offset = 0x4, fixed_abs, tag = 'smem constant byte address 0x4 - core index']
  #allocation1 [shape = 'u32[72,128]{1,0:T(1,128)}', space=vmem, size = 0x9000, scoped, tag = 'internal scratch']
  #allocation2 [shape = 'f32[40,1792]{1,0:T(8,128)}', space=vmem, size = 0x46000, scoped, tag = 'scratch operand']
  #allocation3 [shape = 's32[1]{0}', space=sflag, size = 0x4, scoped, tag = 'scratch operand']
  #allocation4 [shape = 's32[]', space=sflag, size = 0x4, offset = 0, fixed_abs, tag = 'sflag constant byte address 0x0 - dummy sync flag']
  %s0 = inlined_call_operand.vmem [shape: f32[32,32], index: 0, kind: input, shape index: {}]
  %s1 = inlined_call_operand.vmem [shape: f32[152,64], index: 1, kind: input, shape index: {}]
  %s2 = inlined_call_operand.vmem [shape: f32[40,1792], index: 2, kind: input, shape index: {}]
  %s3 = inlined_call_operand.vmem [shape: f32[8,1792], index: 3, kind: output, shape index: {}]
  %s4 = sld [smem:[#allocation0]]
  $region37: #{mlp_model_decoder_forward.1} parent=0
    _
  %s6 = ssub.s32 1, %s4
  %s7 = scalar_select 0, %s6, %s4
  // Predicated region
  $region2: #{mlp_model_decoder_forward.1} parent=0 // pred_check
    _
  $region3: #{mlp_model_decoder_forward.1} parent=0 // pred_check_branch
    %9 = sbr.rel (0) target = $region5
  $region4: #{mlp_model_decoder_forward.1} parent=0 // pred_region
    _
  $region5: #{mlp_model_decoder_forward.1} parent=0 // pred_fallthru
    _
  // Predicated region
  $region6: #{mlp_model_decoder_forward.1} parent=0 // pred_check
    _
  $region7: #{mlp_model_decoder_forward.1} parent=0 // pred_check_branch
    %11 = sbr.rel (0) target = $region9
  $region8: #{mlp_model_decoder_forward.1} parent=0 // pred_region
    _
  $region9: #{mlp_model_decoder_forward.1} parent=0 // pred_fallthru
    _
  // Predicated region
  $region10: #{mlp_model_decoder_forward.1} parent=0 // pred_check
    _
  $region11: #{mlp_model_decoder_forward.1} parent=0 // pred_check_branch
    %13 = sbr.rel (0) target = $region13
  $region12: #{mlp_model_decoder_forward.1} parent=0 // pred_region
    loop: start=0, step=1, limit=1
    $region14: #{mlp_model_decoder_forward.1} parent=12 // loop_pre_header
      _
    $region15: #{mlp_model_decoder_forward.1} parent=12 // loop_header
      %s15 = sphi 0, %s19
      %p16 = scmp.ge.s32.totalorder %s15, 1
      %s20 = sphi %s2, %s2
      %s21 = sphi [#allocation2], [#allocation2]
    $region16: #{mlp_model_decoder_forward.1} parent=12 // loop_header_branch
      %18 = sbr.rel (%p16) target = $region20
    $region17: #{mlp_model_decoder_forward.1} parent=12 // loop_body
      %v22 = vld [vmem:[%s20] sm:$0xff]
      %23 = vst [vmem:[%s21] sm:$0xff] %v22
      %v24 = vld [vmem:[%s20 + $0x8] sm:$0xff]
      %25 = vst [vmem:[%s21 + $0x8] sm:$0xff] %v24
      %v26 = vld [vmem:[%s20 + $0x10] sm:$0xff]
      %27 = vst [vmem:[%s21 + $0x10] sm:$0xff] %v26
      %v28 = vld [vmem:[%s20 + $0x18] sm:$0xff]
      %29 = vst [vmem:[%s21 + $0x18] sm:$0xff] %v28
      %v30 = vld [vmem:[%s20 + $0x20] sm:$0xff]
      %31 = vst [vmem:[%s21 + $0x20] sm:$0xff] %v30
      %v32 = vld [vmem:[%s20 + $0x28] sm:$0xff]
      %33 = vst [vmem:[%s21 + $0x28] sm:$0xff] %v32
      %v34 = vld [vmem:[%s20 + $0x30] sm:$0xff]
      %35 = vst [vmem:[%s21 + $0x30] sm:$0xff] %v34
      %v36 = vld [vmem:[%s20 + $0x38] sm:$0xff]
      %37 = vst [vmem:[%s21 + $0x38] sm:$0xff] %v36
      %v38 = vld [vmem:[%s20 + $0x40] sm:$0xff]
      %39 = vst [vmem:[%s21 + $0x40] sm:$0xff] %v38
      %v40 = vld [vmem:[%s20 + $0x48] sm:$0xff]
      %41 = vst [vmem:[%s21 + $0x48] sm:$0xff] %v40
      %v42 = vld [vmem:[%s20 + $0x50] sm:$0xff]
      %43 = vst [vmem:[%s21 + $0x50] sm:$0xff] %v42
      %v44 = vld [vmem:[%s20 + $0x58] sm:$0xff]
      %45 = vst [vmem:[%s21 + $0x58] sm:$0xff] %v44
      %v46 = vld [vmem:[%s20 + $0x60] sm:$0xff]
      %47 = vst [vmem:[%s21 + $0x60] sm:$0xff] %v46
      %v48 = vld [vmem:[%s20 + $0x68] sm:$0xff]
      %49 = vst [vmem:[%s21 + $0x68] sm:$0xff] %v48
      %v50 = vld [vmem:[%s20 + $0x70] sm:$0xff]
      %51 = vst [vmem:[%s21 + $0x70] sm:$0xff] %v50
      %v52 = vld [vmem:[%s20 + $0x78] sm:$0xff]
      %53 = vst [vmem:[%s21 + $0x78] sm:$0xff] %v52
      %v54 = vld [vmem:[%s20 + $0x80] sm:$0xff]
      %55 = vst [vmem:[%s21 + $0x80] sm:$0xff] %v54
      %v56 = vld [vmem:[%s20 + $0x88] sm:$0xff]
      %57 = vst [vmem:[%s21 + $0x88] sm:$0xff] %v56
      %v58 = vld [vmem:[%s20 + $0x90] sm:$0xff]
      %59 = vst [vmem:[%s21 + $0x90] sm:$0xff] %v58
      %v60 = vld [vmem:[%s20 + $0x98] sm:$0xff]
      %61 = vst [vmem:[%s21 + $0x98] sm:$0xff] %v60
      %v62 = vld [vmem:[%s20 + $0xa0] sm:$0xff]
      %63 = vst [vmem:[%s21 + $0xa0] sm:$0xff] %v62
      %v64 = vld [vmem:[%s20 + $0xa8] sm:$0xff]
      %65 = vst [vmem:[%s21 + $0xa8] sm:$0xff] %v64
      %v66 = vld [vmem:[%s20 + $0xb0] sm:$0xff]
      %67 = vst [vmem:[%s21 + $0xb0] sm:$0xff] %v66
      %v68 = vld [vmem:[%s20 + $0xb8] sm:$0xff]
      %69 = vst [vmem:[%s21 + $0xb8] sm:$0xff] %v68
      %v70 = vld [vmem:[%s20 + $0xc0] sm:$0xff]
      %71 = vst [vmem:[%s21 + $0xc0] sm:$0xff] %v70
      %v72 = vld [vmem:[%s20 + $0xc8] sm:$0xff]
      %73 = vst [vmem:[%s21 + $0xc8] sm:$0xff] %v72
      %v74 = vld [vmem:[%s20 + $0xd0] sm:$0xff]
      %75 = vst [vmem:[%s21 + $0xd0] sm:$0xff] %v74
      %v76 = vld [vmem:[%s20 + $0xd8] sm:$0xff]
      %77 = vst [vmem:[%s21 + $0xd8] sm:$0xff] %v76
      %v78 = vld [vmem:[%s20 + $0xe0] sm:$0xff]
      %79 = vst [vmem:[%s21 + $0xe0] sm:$0xff] %v78
      %v80 = vld [vmem:[%s20 + $0xe8] sm:$0xff]
      %81 = vst [vmem:[%s21 + $0xe8] sm:$0xff] %v80
      %v82 = vld [vmem:[%s20 + $0xf0] sm:$0xff]
      %83 = vst [vmem:[%s21 + $0xf0] sm:$0xff] %v82
      %v84 = vld [vmem:[%s20 + $0xf8] sm:$0xff]
      %85 = vst [vmem:[%s21 + $0xf8] sm:$0xff] %v84
      %v86 = vld [vmem:[%s20 + $0x100] sm:$0xff]
      %87 = vst [vmem:[%s21 + $0x100] sm:$0xff] %v86
      %v88 = vld [vmem:[%s20 + $0x108] sm:$0xff]
      %89 = vst [vmem:[%s21 + $0x108] sm:$0xff] %v88
      %v90 = vld [vmem:[%s20 + $0x110] sm:$0xff]
      %91 = vst [vmem:[%s21 + $0x110] sm:$0xff] %v90
      %v92 = vld [vmem:[%s20 + $0x118] sm:$0xff]
      %93 = vst [vmem:[%s21 + $0x118] sm:$0xff] %v92
      %v94 = vld [vmem:[%s20 + $0x120] sm:$0xff]
      %95 = vst [vmem:[%s21 + $0x120] sm:$0xff] %v94
      %v96 = vld [vmem:[%s20 + $0x128] sm:$0xff]
      %97 = vst [vmem:[%s21 + $0x128] sm:$0xff] %v96
      %v98 = vld [vmem:[%s20 + $0x130] sm:$0xff]
      %99 = vst [vmem:[%s21 + $0x130] sm:$0xff] %v98
      %v100 = vld [vmem:[%s20 + $0x138] sm:$0xff]
      %101 = vst [vmem:[%s21 + $0x138] sm:$0xff] %v100
      %v102 = vld [vmem:[%s20 + $0x140] sm:$0xff]
      %103 = vst [vmem:[%s21 + $0x140] sm:$0xff] %v102
      %v104 = vld [vmem:[%s20 + $0x148] sm:$0xff]
      %105 = vst [vmem:[%s21 + $0x148] sm:$0xff] %v104
      %v106 = vld [vmem:[%s20 + $0x150] sm:$0xff]
      %107 = vst [vmem:[%s21 + $0x150] sm:$0xff] %v106
      %v108 = vld [vmem:[%s20 + $0x158] sm:$0xff]
      %109 = vst [vmem:[%s21 + $0x158] sm:$0xff] %v108
      %v110 = vld [vmem:[%s20 + $0x160] sm:$0xff]
      %111 = vst [vmem:[%s21 + $0x160] sm:$0xff] %v110
      %v112 = vld [vmem:[%s20 + $0x168] sm:$0xff]
      %113 = vst [vmem:[%s21 + $0x168] sm:$0xff] %v112
      %v114 = vld [vmem:[%s20 + $0x170] sm:$0xff]
      %115 = vst [vmem:[%s21 + $0x170] sm:$0xff] %v114
      %v116 = vld [vmem:[%s20 + $0x178] sm:$0xff]
      %117 = vst [vmem:[%s21 + $0x178] sm:$0xff] %v116
      %v118 = vld [vmem:[%s20 + $0x180] sm:$0xff]
      %119 = vst [vmem:[%s21 + $0x180] sm:$0xff] %v118
      %v120 = vld [vmem:[%s20 + $0x188] sm:$0xff]
      %121 = vst [vmem:[%s21 + $0x188] sm:$0xff] %v120
      %v122 = vld [vmem:[%s20 + $0x190] sm:$0xff]
      %123 = vst [vmem:[%s21 + $0x190] sm:$0xff] %v122
      %v124 = vld [vmem:[%s20 + $0x198] sm:$0xff]
      %125 = vst [vmem:[%s21 + $0x198] sm:$0xff] %v124
      %v126 = vld [vmem:[%s20 + $0x1a0] sm:$0xff]
      %127 = vst [vmem:[%s21 + $0x1a0] sm:$0xff] %v126
      %v128 = vld [vmem:[%s20 + $0x1a8] sm:$0xff]
      %129 = vst [vmem:[%s21 + $0x1a8] sm:$0xff] %v128
      %v130 = vld [vmem:[%s20 + $0x1b0] sm:$0xff]
      %131 = vst [vmem:[%s21 + $0x1b0] sm:$0xff] %v130
      %v132 = vld [vmem:[%s20 + $0x1b8] sm:$0xff]
      %133 = vst [vmem:[%s21 + $0x1b8] sm:$0xff] %v132
      %v134 = vld [vmem:[%s20 + $0x1c0] sm:$0xff]
      %135 = vst [vmem:[%s21 + $0x1c0] sm:$0xff] %v134
      %v136 = vld [vmem:[%s20 + $0x1c8] sm:$0xff]
      %137 = vst [vmem:[%s21 + $0x1c8] sm:$0xff] %v136
      %v138 = vld [vmem:[%s20 + $0x1d0] sm:$0xff]
      %139 = vst [vmem:[%s21 + $0x1d0] sm:$0xff] %v138
      %v140 = vld [vmem:[%s20 + $0x1d8] sm:$0xff]
      %141 = vst [vmem:[%s21 + $0x1d8] sm:$0xff] %v140
      %v142 = vld [vmem:[%s20 + $0x1e0] sm:$0xff]
      %143 = vst [vmem:[%s21 + $0x1e0] sm:$0xff] %v142
      %v144 = vld [vmem:[%s20 + $0x1e8] sm:$0xff]
      %145 = vst [vmem:[%s21 + $0x1e8] sm:$0xff] %v144
      %v146 = vld [vmem:[%s20 + $0x1f0] sm:$0xff]
      %147 = vst [vmem:[%s21 + $0x1f0] sm:$0xff] %v146
      %v148 = vld [vmem:[%s20 + $0x1f8] sm:$0xff]
      %149 = vst [vmem:[%s21 + $0x1f8] sm:$0xff] %v148
      %v150 = vld [vmem:[%s20 + $0x200] sm:$0xff]
      %151 = vst [vmem:[%s21 + $0x200] sm:$0xff] %v150
      %v152 = vld [vmem:[%s20 + $0x208] sm:$0xff]
      %153 = vst [vmem:[%s21 + $0x208] sm:$0xff] %v152
      %v154 = vld [vmem:[%s20 + $0x210] sm:$0xff]
      %155 = vst [vmem:[%s21 + $0x210] sm:$0xff] %v154
      %v156 = vld [vmem:[%s20 + $0x218] sm:$0xff]
      %157 = vst [vmem:[%s21 + $0x218] sm:$0xff] %v156
      %v158 = vld [vmem:[%s20 + $0x220] sm:$0xff]
      %159 = vst [vmem:[%s21 + $0x220] sm:$0xff] %v158
      %v160 = vld [vmem:[%s20 + $0x228] sm:$0xff]
      %161 = vst [vmem:[%s21 + $0x228] sm:$0xff] %v160
    $region18: #{mlp_model_decoder_forward.1} parent=12 // loop_footer
      %s19 = sadd.s32 1, %s15
    $region19: #{mlp_model_decoder_forward.1} parent=12 // loop_footer_branch
      %14 = sbr.rel target = $region15
    $region20: #{mlp_model_decoder_forward.1} parent=12 // loop_exit
      _
  $region13: #{mlp_model_decoder_forward.1} parent=0 // pred_fallthru
    _
  // Predicated region
  $region21: #{mlp_model_decoder_forward.1} parent=0 // pred_check
    _
  $region22: #{mlp_model_decoder_forward.1} parent=0 // pred_check_branch
    %163 = sbr.rel target = $region24
  $region23: #{mlp_model_decoder_forward.1} parent=0 // pred_region
    _
  $region24: #{mlp_model_decoder_forward.1} parent=0 // pred_fallthru
    _
  // Predicated region
  $region25: #{mlp_model_decoder_forward.1} parent=0 // pred_check
    _
  $region26: #{mlp_model_decoder_forward.1} parent=0 // pred_check_branch
    %166 = sbr.rel (0) target = $region28
  $region27: #{mlp_model_decoder_forward.1} parent=0 // pred_region
    %167 = vsyncadd [#allocation3], 8960
  $region28: #{mlp_model_decoder_forward.1} parent=0 // pred_fallthru
    _
  %v168 = vld [vmem:[%s0] sm:$0xff]
  %v169 = vld [vmem:[%s0 + $0x8] sm:$0xff]
  %v170 = vld [vmem:[%s0 + $0x10] sm:$0xff]
  %v171 = vld [vmem:[%s0 + $0x18] sm:$0xff]
  %v172 = vld [vmem:[%s1] sm:$0xff]
  %v173 = vld [vmem:[%s1 + $0x8] sm:$0xff]
  %v174 = vld [vmem:[%s1 + $0x10] sm:$0xff]
  %v175 = vld [vmem:[%s1 + $0x18] sm:$0xff]
  %vm176 = vcmask 261120
  %v178 = vsel %vm176, %v168, 0
  %v181 = vsel %vm176, %v169, 0
  %v184 = vsel %vm176, %v170, 0
  %v187 = vsel %vm176, %v171, 0
  %189 = vmatpush.msra.mxu0 0.0
  %190 = vmatpush.msra.mxu0 0.0
  %191 = vmatpush.msra.mxu0 0.0
  %192 = vmatpush.msra.mxu0 0.0
  %193 = vmatpush.msra.mxu0 0.0
  %194 = vmatpush.msra.mxu0 0.0
  %195 = vmatpush.msra.mxu0 0.0
  %196 = vmatpush.msra.mxu0 0.0
  %197 = vmatpush.msra.mxu0 0.0
  %198 = vmatpush.msra.mxu0 0.0
  %199 = vmatpush.msra.mxu0 0.0
  %200 = vmatpush.msra.mxu0 0.0
  %201 = vmatpush.msra.mxu0 %v175
  %202 = vmatpush.msra.mxu0 %v174
  %203 = vmatpush.msra.mxu0 %v173
  %204 = vmatpush.msra.mxu0 %v172
  %205 = vmatmul.f32.gmra.mxu0 %v178
  %v206 = vpop.f32.mrf.mxu0
  %v207 = vadd.f32 0.0, %v206
  %208 = vmatmul.f32.gmra.mxu0 %v181
  %v209 = vpop.f32.mrf.mxu0
  %v210 = vadd.f32 0.0, %v209
  %211 = vmatmul.f32.gmra.mxu0 %v184
  %v212 = vpop.f32.mrf.mxu0
  %v213 = vadd.f32 0.0, %v212
  %214 = vmatmul.f32.gmra.mxu0 %v187
  %v215 = vpop.f32.mrf.mxu0
  %v216 = vadd.f32 0.0, %v215
  %217 = vdwg.mxu0
  %v218 = vld [vmem:[%s1 + $0x28] sm:$0xff]
  %v219 = vld [vmem:[%s1 + $0x30] sm:$0xff]
  %v220 = vld [vmem:[%s1 + $0x38] sm:$0xff]
  %v221 = vld [vmem:[%s1 + $0x40] sm:$0xff]
  %222 = vmatpush.msra.mxu0 0.0
  %223 = vmatpush.msra.mxu0 0.0
  %224 = vmatpush.msra.mxu0 0.0
  %225 = vmatpush.msra.mxu0 0.0
  %226 = vmatpush.msra.mxu0 0.0
  %227 = vmatpush.msra.mxu0 0.0
  %228 = vmatpush.msra.mxu0 0.0
  %229 = vmatpush.msra.mxu0 0.0
  %230 = vmatpush.msra.mxu0 0.0
  %231 = vmatpush.msra.mxu0 0.0
  %232 = vmatpush.msra.mxu0 0.0
  %233 = vmatpush.msra.mxu0 0.0
  %234 = vmatpush.msra.mxu0 %v221
  %235 = vmatpush.msra.mxu0 %v220
  %236 = vmatpush.msra.mxu0 %v219
  %237 = vmatpush.msra.mxu0 %v218
  %238 = vmatmul.f32.gmra.mxu0 %v178
  %v239 = vpop.f32.mrf.mxu0
  %v240 = vadd.f32 0.0, %v239
  %241 = vmatmul.f32.gmra.mxu0 %v181
  %v242 = vpop.f32.mrf.mxu0
  %v243 = vadd.f32 0.0, %v242
  %244 = vmatmul.f32.gmra.mxu0 %v184
  %v245 = vpop.f32.mrf.mxu0
  %v246 = vadd.f32 0.0, %v245
  %247 = vmatmul.f32.gmra.mxu0 %v187
  %v248 = vpop.f32.mrf.mxu0
  %v249 = vadd.f32 0.0, %v248
  %250 = vdwg.mxu0
  %vm251 = vcmask 31744
  %v252 = vsel %vm251, %v207, -inf
  %v253 = vsel %vm251, %v210, -inf
  %v254 = vsel %vm251, %v213, -inf
  %v255 = vsel %vm251, %v216, -inf
  %v256 = vmax.f32 %v252, %v253
  %v257 = vmax.f32 %v254, %v255
  %v258 = vmax.f32 %v256, %v257
  %259 = vmax.xlane.f32.xlu0 %v258
  %v260 = vpop.xlane.xlu0 %259
  %v261 = vrot.slane %v260, 4
  %v262 = vmax.f32 %v260, %v261
  %v263 = vrot.slane %v262, 2
  %v264 = vmax.f32 %v262, %v263
  %v265 = vrot.slane %v264, 1
  %v266 = vmax.f32 %v264, %v265
  %s267 = vtos %v266
  %v268 = vstv %s267
  %v269 = vsub.f32 %v207, %v268
  %v270 = vsub.f32 %v210, %v268
  %v271 = vsub.f32 %v213, %v268
  %v272 = vsub.f32 %v216, %v268
  %v273 = vmul.f32 %v269, 1.442695
  %v274 = vpow.pop %v273
  %v275 = vmul.f32 %v270, 1.442695
  %v276 = vpow.pop %v275
  %v277 = vmul.f32 %v271, 1.442695
  %v278 = vpow.pop %v277
  %v279 = vmul.f32 %v272, 1.442695
  %v280 = vpow.pop %v279
  %v281 = vld [vmem:[%s1 + $0x20] sm:$0xf]
  %v283 = vsel %vm251, %v274, 0
  %v286 = vsel %vm251, %v276, 0
  %v289 = vsel %vm251, %v278, 0
  %v292 = vsel %vm251, %v280, 0
  %vm294 = vcmask 1043456
  %v296 = vsel %vm294, %v281, 0
  %298 = vmatpush.msra.mxu0 0.0
  %299 = vmatpush.msra.mxu0 0.0
  %300 = vmatpush.msra.mxu0 0.0
  %301 = vmatpush.msra.mxu0 0.0
  %302 = vmatpush.msra.mxu0 0.0
  %303 = vmatpush.msra.mxu0 0.0
  %304 = vmatpush.msra.mxu0 0.0
  %305 = vmatpush.msra.mxu0 0.0
  %306 = vmatpush.msra.mxu0 0.0
  %307 = vmatpush.msra.mxu0 0.0
  %308 = vmatpush.msra.mxu0 0.0
  %309 = vmatpush.msra.mxu0 0.0
  %310 = vmatpush.msra.mxu0 0.0
  %311 = vmatpush.msra.mxu0 0.0
  %312 = vmatpush.msra.mxu0 0.0
  %313 = vmatpush.msra.mxu0 %v296
  %314 = vmatmul.f32.gmra.mxu0 %v283
  %v315 = vpop.f32.mrf.mxu0
  %v316 = vadd.f32 0.0, %v315
  %317 = vmatmul.f32.gmra.mxu0 %v286
  %v318 = vpop.f32.mrf.mxu0
  %v319 = vadd.f32 0.0, %v318
  %320 = vmatmul.f32.gmra.mxu0 %v289
  %v321 = vpop.f32.mrf.mxu0
  %v322 = vadd.f32 0.0, %v321
  %323 = vmatmul.f32.gmra.mxu0 %v292
  %v324 = vpop.f32.mrf.mxu0
  %v325 = vadd.f32 0.0, %v324
  %326 = vdwg.mxu0
  %v327 = vld [vmem:[%s1 + $0x90] sm:$0xff]
  %v329 = vsel %vm176, %v327, 0
  %331 = vmatpush.msra.mxu0 0.0
  %332 = vmatpush.msra.mxu0 0.0
  %333 = vmatpush.msra.mxu0 0.0
  %334 = vmatpush.msra.mxu0 0.0
  %335 = vmatpush.msra.mxu0 0.0
  %336 = vmatpush.msra.mxu0 0.0
  %337 = vmatpush.msra.mxu0 0.0
  %338 = vmatpush.msra.mxu0 0.0
  %339 = vmatpush.msra.mxu0 0.0
  %340 = vmatpush.msra.mxu0 0.0
  %341 = vmatpush.msra.mxu0 0.0
  %342 = vmatpush.msra.mxu0 0.0
  %343 = vmatpush.msra.mxu0 %v325
  %344 = vmatpush.msra.mxu0 %v322
  %345 = vmatpush.msra.mxu0 %v319
  %346 = vmatpush.msra.mxu0 %v316
  %347 = vmatmul.f32.gmra.mxu0 %v329
  %v348 = vpop.f32.mrf.mxu0
  %v349 = vadd.f32 0.0, %v348
  %350 = vdwg.mxu0
  %v351 = vmul.f32 %v316, %v240
  %v352 = vmul.f32 %v319, %v243
  %v353 = vmul.f32 %v322, %v246
  %v354 = vmul.f32 %v325, %v249
  %355 = vmatpush.msra.mxu0 0.0
  %356 = vmatpush.msra.mxu0 0.0
  %357 = vmatpush.msra.mxu0 0.0
  %358 = vmatpush.msra.mxu0 0.0
  %359 = vmatpush.msra.mxu0 0.0
  %360 = vmatpush.msra.mxu0 0.0
  %361 = vmatpush.msra.mxu0 0.0
  %362 = vmatpush.msra.mxu0 0.0
  %363 = vmatpush.msra.mxu0 0.0
  %364 = vmatpush.msra.mxu0 0.0
  %365 = vmatpush.msra.mxu0 0.0
  %366 = vmatpush.msra.mxu0 0.0
  %367 = vmatpush.msra.mxu0 %v354
  %368 = vmatpush.msra.mxu0 %v353
  %369 = vmatpush.msra.mxu0 %v352
  %370 = vmatpush.msra.mxu0 %v351
  %371 = vmatmul.f32.gmra.mxu0 %v329
  %v372 = vpop.f32.mrf.mxu0
  %v373 = vadd.f32 0.0, %v372
  %374 = vdwg.mxu0
  %v375 = vrcp.pop %v349
  %v376 = vmul.f32 %v349, %v375
  %v377 = vsub.f32 1.0, %v376
  %v378 = vmul.f32 %v375, %v377
  %v379 = vadd.f32 %v375, %v378
  %vm380 = vweird.f32 %v349
  %vm381 = vweird.f32 %v375
  %vm382 = vmor %vm380, %vm381
  %v383 = vsel %vm382, %v375, %v379
  %v384 = vand.u32 2147483647, %v349
  %vm385 = vcmp.eq.f32.partialorder %v384, 8.507059e+37
  %v386 = vand.u32 %v349, 2147483648
  %v387 = vor.u32 1.1754944e-38, %v386
  %v388 = vsel %vm385, %v387, %v383
  %v389 = vmul.f32 %v373, %v388
  %v390 = vld [vmem:[%s1 + $0x48] sm:$0xff]
  %v391 = vld [vmem:[%s1 + $0x50] sm:$0xff]
  %v392 = vld [vmem:[%s1 + $0x58] sm:$0xff]
  %v393 = vld [vmem:[%s1 + $0x60] sm:$0xff]
  %v394 = vld [vmem:[%s1 + $0x68] sm:$0xff]
  %v395 = vld [vmem:[%s1 + $0x70] sm:$0xff]
  %v396 = vld [vmem:[%s1 + $0x78] sm:$0xff]
  %v397 = vld [vmem:[%s1 + $0x80] sm:$0xff]
  %v398 = vld [vmem:[%s1 + $0x88] sm:$0x1]
  %v399 = vperm.slane %v398, 0
  %vm400 = vcmask 523264
  %v402 = vsel %vm400, %v389, 0
  %404 = vmatpush.msra.mxu0 0.0
  %405 = vmatpush.msra.mxu0 0.0
  %406 = vmatpush.msra.mxu0 0.0
  %407 = vmatpush.msra.mxu0 0.0
  %408 = vmatpush.msra.mxu0 0.0
  %409 = vmatpush.msra.mxu0 0.0
  %410 = vmatpush.msra.mxu0 0.0
  %411 = vmatpush.msra.mxu0 0.0
  %412 = vmatpush.msra.mxu0 %v397
  %413 = vmatpush.msra.mxu0 %v396
  %414 = vmatpush.msra.mxu0 %v395
  %415 = vmatpush.msra.mxu0 %v394
  %416 = vmatpush.msra.mxu0 %v393
  %417 = vmatpush.msra.mxu0 %v392
  %418 = vmatpush.msra.mxu0 %v391
  %419 = vmatpush.msra.mxu0 %v390
  %420 = vmatmul.f32.gmra.mxu0 %v402
  %v421 = vpop.f32.mrf.mxu0
  %v422 = vadd.f32 %v399, %v421
  %423 = vdwg.mxu0
  %v424 = vmax.f32 %v422, 0.0
  %s425 = smul.u32 8, 5
  %s426 = smul.u32 %s425, 14
  %s427 = sshll.u32 %s426, 4
  %428 = dma.done [#allocation3], %s427
  %v429 = vld [vmem:[#allocation2] sm:$0xff]
  %v430 = vld [vmem:[#allocation2 + $0x8] sm:$0xff]
  %v431 = vld [vmem:[#allocation2 + $0x10] sm:$0xff]
  %v432 = vld [vmem:[#allocation2 + $0x18] sm:$0xff]
  %v433 = vld [vmem:[#allocation2 + $0x20] sm:$0xff]
  %v434 = vld [vmem:[#allocation2 + $0x28] sm:$0xff]
  %v435 = vld [vmem:[#allocation2 + $0x30] sm:$0xff]
  %v436 = vld [vmem:[#allocation2 + $0x38] sm:$0xff]
  %v437 = vld [vmem:[#allocation2 + $0x40] sm:$0xff]
  %v438 = vld [vmem:[#allocation2 + $0x48] sm:$0xff]
  %v439 = vld [vmem:[#allocation2 + $0x50] sm:$0xff]
  %v440 = vld [vmem:[#allocation2 + $0x58] sm:$0xff]
  %v441 = vld [vmem:[#allocation2 + $0x60] sm:$0xff]
  %v442 = vld [vmem:[#allocation2 + $0x68] sm:$0xff]
  %v443 = vld [vmem:[#allocation2 + $0x70] sm:$0xff]
  %v444 = vld [vmem:[#allocation2 + $0x78] sm:$0xff]
  %v445 = vld [vmem:[#allocation2 + $0x80] sm:$0xff]
  %v446 = vld [vmem:[#allocation2 + $0x88] sm:$0xff]
  %v447 = vld [vmem:[#allocation2 + $0x90] sm:$0xff]
  %v448 = vld [vmem:[#allocation2 + $0x98] sm:$0xff]
  %v449 = vld [vmem:[#allocation2 + $0xa0] sm:$0xff]
  %v450 = vld [vmem:[#allocation2 + $0xa8] sm:$0xff]
  %v451 = vld [vmem:[#allocation2 + $0xb0] sm:$0xff]
  %v452 = vld [vmem:[#allocation2 + $0xb8] sm:$0xff]
  %v453 = vld [vmem:[#allocation2 + $0xc0] sm:$0xff]
  %v454 = vld [vmem:[#allocation2 + $0xc8] sm:$0xff]
  %v455 = vld [vmem:[#allocation2 + $0xd0] sm:$0xff]
  %v456 = vld [vmem:[#allocation2 + $0xd8] sm:$0xff]
  %v457 = vld [vmem:[#allocation2 + $0xe0] sm:$0xff]
  %v458 = vld [vmem:[#allocation2 + $0xe8] sm:$0xff]
  %v459 = vld [vmem:[#allocation2 + $0xf0] sm:$0xff]
  %v460 = vld [vmem:[#allocation2 + $0xf8] sm:$0xff]
  %v461 = vld [vmem:[#allocation2 + $0x100] sm:$0xff]
  %v462 = vld [vmem:[#allocation2 + $0x108] sm:$0xff]
  %v463 = vld [vmem:[#allocation2 + $0x110] sm:$0xff]
  %v464 = vld [vmem:[#allocation2 + $0x118] sm:$0xff]
  %v465 = vld [vmem:[#allocation2 + $0x120] sm:$0xff]
  %v466 = vld [vmem:[#allocation2 + $0x128] sm:$0xff]
  %v467 = vld [vmem:[#allocation2 + $0x130] sm:$0xff]
  %v468 = vld [vmem:[#allocation2 + $0x138] sm:$0xff]
  %v469 = vld [vmem:[#allocation2 + $0x140] sm:$0xff]
  %v470 = vld [vmem:[#allocation2 + $0x148] sm:$0xff]
  %v471 = vld [vmem:[#allocation2 + $0x150] sm:$0xff]
  %v472 = vld [vmem:[#allocation2 + $0x158] sm:$0xff]
  %v473 = vld [vmem:[#allocation2 + $0x160] sm:$0xff]
  %v474 = vld [vmem:[#allocation2 + $0x168] sm:$0xff]
  %v475 = vld [vmem:[#allocation2 + $0x170] sm:$0xff]
  %v476 = vld [vmem:[#allocation2 + $0x178] sm:$0xff]
  %v477 = vld [vmem:[#allocation2 + $0x180] sm:$0xff]
  %v478 = vld [vmem:[#allocation2 + $0x188] sm:$0xff]
  %v479 = vld [vmem:[#allocation2 + $0x190] sm:$0xff]
  %v480 = vld [vmem:[#allocation2 + $0x198] sm:$0xff]
  %v481 = vld [vmem:[#allocation2 + $0x1a0] sm:$0xff]
  %v482 = vld [vmem:[#allocation2 + $0x1a8] sm:$0xff]
  %v483 = vld [vmem:[#allocation2 + $0x1b0] sm:$0xff]
  %v484 = vld [vmem:[#allocation2 + $0x1b8] sm:$0xff]
  %v485 = vld [vmem:[#allocation2 + $0x1c0] sm:$0xff]
  %v486 = vld [vmem:[#allocation2 + $0x1c8] sm:$0xff]
  %v487 = vld [vmem:[#allocation2 + $0x1d0] sm:$0xff]
  %v488 = vld [vmem:[#allocation2 + $0x1d8] sm:$0xff]
  %v489 = vld [vmem:[#allocation2 + $0x1e0] sm:$0xff]
  %v490 = vld [vmem:[#allocation2 + $0x1e8] sm:$0xff]
  %v491 = vld [vmem:[#allocation2 + $0x1f0] sm:$0xff]
  %v492 = vld [vmem:[#allocation2 + $0x1f8] sm:$0xff]
  %v493 = vld [vmem:[#allocation2 + $0x200] sm:$0xff]
  %v494 = vld [vmem:[#allocation2 + $0x208] sm:$0xff]
  %v495 = vld [vmem:[#allocation2 + $0x210] sm:$0xff]
  %v496 = vld [vmem:[#allocation2 + $0x218] sm:$0xff]
  %v497 = vld [vmem:[#allocation2 + $0x220] sm:$0xff]
  %v498 = vld [vmem:[#allocation2 + $0x228] sm:$0xff]
  %vm499 = vcmask 326656
  %v501 = vsel %vm499, %v424, 0
  %503 = vmatpush.msra.mxu0 0.0
  %504 = vmatpush.msra.mxu0 0.0
  %505 = vmatpush.msra.mxu0 0.0
  %506 = vmatpush.msra.mxu0 0.0
  %507 = vmatpush.msra.mxu0 0.0
  %508 = vmatpush.msra.mxu0 0.0
  %509 = vmatpush.msra.mxu0 0.0
  %510 = vmatpush.msra.mxu0 0.0
  %511 = vmatpush.msra.mxu0 0.0
  %512 = vmatpush.msra.mxu0 0.0
  %513 = vmatpush.msra.mxu0 0.0
  %514 = vmatpush.msra.mxu0 %v485
  %515 = vmatpush.msra.mxu0 %v471
  %516 = vmatpush.msra.mxu0 %v457
  %517 = vmatpush.msra.mxu0 %v443
  %518 = vmatpush.msra.mxu0 %v429
  %519 = vmatmul.f32.gmra.mxu0 %v501
  %v520 = vpop.f32.mrf.mxu0
  %v521 = vadd.f32 0.0, %v520
  %522 = vdwg.mxu0
  %523 = vmatpush.msra.mxu0 0.0
  %524 = vmatpush.msra.mxu0 0.0
  %525 = vmatpush.msra.mxu0 0.0
  %526 = vmatpush.msra.mxu0 0.0
  %527 = vmatpush.msra.mxu0 0.0
  %528 = vmatpush.msra.mxu0 0.0
  %529 = vmatpush.msra.mxu0 0.0
  %530 = vmatpush.msra.mxu0 0.0
  %531 = vmatpush.msra.mxu0 0.0
  %532 = vmatpush.msra.mxu0 0.0
  %533 = vmatpush.msra.mxu0 0.0
  %534 = vmatpush.msra.mxu0 %v486
  %535 = vmatpush.msra.mxu0 %v472
  %536 = vmatpush.msra.mxu0 %v458
  %537 = vmatpush.msra.mxu0 %v444
  %538 = vmatpush.msra.mxu0 %v430
  %539 = vmatmul.f32.gmra.mxu0 %v501
  %v540 = vpop.f32.mrf.mxu0
  %v541 = vadd.f32 0.0, %v540
  %542 = vdwg.mxu0
  %543 = vmatpush.msra.mxu0 0.0
  %544 = vmatpush.msra.mxu0 0.0
  %545 = vmatpush.msra.mxu0 0.0
  %546 = vmatpush.msra.mxu0 0.0
  %547 = vmatpush.msra.mxu0 0.0
  %548 = vmatpush.msra.mxu0 0.0
  %549 = vmatpush.msra.mxu0 0.0
  %550 = vmatpush.msra.mxu0 0.0
  %551 = vmatpush.msra.mxu0 0.0
  %552 = vmatpush.msra.mxu0 0.0
  %553 = vmatpush.msra.mxu0 0.0
  %554 = vmatpush.msra.mxu0 %v487
  %555 = vmatpush.msra.mxu0 %v473
  %556 = vmatpush.msra.mxu0 %v459
  %557 = vmatpush.msra.mxu0 %v445
  %558 = vmatpush.msra.mxu0 %v431
  %559 = vmatmul.f32.gmra.mxu0 %v501
  %v560 = vpop.f32.mrf.mxu0
  %v561 = vadd.f32 0.0, %v560
  %562 = vdwg.mxu0
  %563 = vmatpush.msra.mxu0 0.0
  %564 = vmatpush.msra.mxu0 0.0
  %565 = vmatpush.msra.mxu0 0.0
  %566 = vmatpush.msra.mxu0 0.0
  %567 = vmatpush.msra.mxu0 0.0
  %568 = vmatpush.msra.mxu0 0.0
  %569 = vmatpush.msra.mxu0 0.0
  %570 = vmatpush.msra.mxu0 0.0
  %571 = vmatpush.msra.mxu0 0.0
  %572 = vmatpush.msra.mxu0 0.0
  %573 = vmatpush.msra.mxu0 0.0
  %574 = vmatpush.msra.mxu0 %v488
  %575 = vmatpush.msra.mxu0 %v474
  %576 = vmatpush.msra.mxu0 %v460
  %577 = vmatpush.msra.mxu0 %v446
  %578 = vmatpush.msra.mxu0 %v432
  %579 = vmatmul.f32.gmra.mxu0 %v501
  %v580 = vpop.f32.mrf.mxu0
  %v581 = vadd.f32 0.0, %v580
  %582 = vdwg.mxu0
  %583 = vmatpush.msra.mxu0 0.0
  %584 = vmatpush.msra.mxu0 0.0
  %585 = vmatpush.msra.mxu0 0.0
  %586 = vmatpush.msra.mxu0 0.0
  %587 = vmatpush.msra.mxu0 0.0
  %588 = vmatpush.msra.mxu0 0.0
  %589 = vmatpush.msra.mxu0 0.0
  %590 = vmatpush.msra.mxu0 0.0
  %591 = vmatpush.msra.mxu0 0.0
  %592 = vmatpush.msra.mxu0 0.0
  %593 = vmatpush.msra.mxu0 0.0
  %594 = vmatpush.msra.mxu0 %v489
  %595 = vmatpush.msra.mxu0 %v475
  %596 = vmatpush.msra.mxu0 %v461
  %597 = vmatpush.msra.mxu0 %v447
  %598 = vmatpush.msra.mxu0 %v433
  %599 = vmatmul.f32.gmra.mxu0 %v501
  %v600 = vpop.f32.mrf.mxu0
  %v601 = vadd.f32 0.0, %v600
  %602 = vdwg.mxu0
  %603 = vmatpush.msra.mxu0 0.0
  %604 = vmatpush.msra.mxu0 0.0
  %605 = vmatpush.msra.mxu0 0.0
  %606 = vmatpush.msra.mxu0 0.0
  %607 = vmatpush.msra.mxu0 0.0
  %608 = vmatpush.msra.mxu0 0.0
  %609 = vmatpush.msra.mxu0 0.0
  %610 = vmatpush.msra.mxu0 0.0
  %611 = vmatpush.msra.mxu0 0.0
  %612 = vmatpush.msra.mxu0 0.0
  %613 = vmatpush.msra.mxu0 0.0
  %614 = vmatpush.msra.mxu0 %v490
  %615 = vmatpush.msra.mxu0 %v476
  %616 = vmatpush.msra.mxu0 %v462
  %617 = vmatpush.msra.mxu0 %v448
  %618 = vmatpush.msra.mxu0 %v434
  %619 = vmatmul.f32.gmra.mxu0 %v501
  %v620 = vpop.f32.mrf.mxu0
  %v621 = vadd.f32 0.0, %v620
  %622 = vdwg.mxu0
  %623 = vmatpush.msra.mxu0 0.0
  %624 = vmatpush.msra.mxu0 0.0
  %625 = vmatpush.msra.mxu0 0.0
  %626 = vmatpush.msra.mxu0 0.0
  %627 = vmatpush.msra.mxu0 0.0
  %628 = vmatpush.msra.mxu0 0.0
  %629 = vmatpush.msra.mxu0 0.0
  %630 = vmatpush.msra.mxu0 0.0
  %631 = vmatpush.msra.mxu0 0.0
  %632 = vmatpush.msra.mxu0 0.0
  %633 = vmatpush.msra.mxu0 0.0
  %634 = vmatpush.msra.mxu0 %v491
  %635 = vmatpush.msra.mxu0 %v477
  %636 = vmatpush.msra.mxu0 %v463
  %637 = vmatpush.msra.mxu0 %v449
  %638 = vmatpush.msra.mxu0 %v435
  %639 = vmatmul.f32.gmra.mxu0 %v501
  %v640 = vpop.f32.mrf.mxu0
  %v641 = vadd.f32 0.0, %v640
  %642 = vdwg.mxu0
  %643 = vmatpush.msra.mxu0 0.0
  %644 = vmatpush.msra.mxu0 0.0
  %645 = vmatpush.msra.mxu0 0.0
  %646 = vmatpush.msra.mxu0 0.0
  %647 = vmatpush.msra.mxu0 0.0
  %648 = vmatpush.msra.mxu0 0.0
  %649 = vmatpush.msra.mxu0 0.0
  %650 = vmatpush.msra.mxu0 0.0
  %651 = vmatpush.msra.mxu0 0.0
  %652 = vmatpush.msra.mxu0 0.0
  %653 = vmatpush.msra.mxu0 0.0
  %654 = vmatpush.msra.mxu0 %v492
  %655 = vmatpush.msra.mxu0 %v478
  %656 = vmatpush.msra.mxu0 %v464
  %657 = vmatpush.msra.mxu0 %v450
  %658 = vmatpush.msra.mxu0 %v436
  %659 = vmatmul.f32.gmra.mxu0 %v501
  %v660 = vpop.f32.mrf.mxu0
  %v661 = vadd.f32 0.0, %v660
  %662 = vdwg.mxu0
  %663 = vmatpush.msra.mxu0 0.0
  %664 = vmatpush.msra.mxu0 0.0
  %665 = vmatpush.msra.mxu0 0.0
  %666 = vmatpush.msra.mxu0 0.0
  %667 = vmatpush.msra.mxu0 0.0
  %668 = vmatpush.msra.mxu0 0.0
  %669 = vmatpush.msra.mxu0 0.0
  %670 = vmatpush.msra.mxu0 0.0
  %671 = vmatpush.msra.mxu0 0.0
  %672 = vmatpush.msra.mxu0 0.0
  %673 = vmatpush.msra.mxu0 0.0
  %674 = vmatpush.msra.mxu0 %v493
  %675 = vmatpush.msra.mxu0 %v479
  %676 = vmatpush.msra.mxu0 %v465
  %677 = vmatpush.msra.mxu0 %v451
  %678 = vmatpush.msra.mxu0 %v437
  %679 = vmatmul.f32.gmra.mxu0 %v501
  %v680 = vpop.f32.mrf.mxu0
  %v681 = vadd.f32 0.0, %v680
  %682 = vdwg.mxu0
  %683 = vmatpush.msra.mxu0 0.0
  %684 = vmatpush.msra.mxu0 0.0
  %685 = vmatpush.msra.mxu0 0.0
  %686 = vmatpush.msra.mxu0 0.0
  %687 = vmatpush.msra.mxu0 0.0
  %688 = vmatpush.msra.mxu0 0.0
  %689 = vmatpush.msra.mxu0 0.0
  %690 = vmatpush.msra.mxu0 0.0
  %691 = vmatpush.msra.mxu0 0.0
  %692 = vmatpush.msra.mxu0 0.0
  %693 = vmatpush.msra.mxu0 0.0
  %694 = vmatpush.msra.mxu0 %v494
  %695 = vmatpush.msra.mxu0 %v480
  %696 = vmatpush.msra.mxu0 %v466
  %697 = vmatpush.msra.mxu0 %v452
  %698 = vmatpush.msra.mxu0 %v438
  %699 = vmatmul.f32.gmra.mxu0 %v501
  %v700 = vpop.f32.mrf.mxu0
  %v701 = vadd.f32 0.0, %v700
  %702 = vdwg.mxu0
  %703 = vmatpush.msra.mxu0 0.0
  %704 = vmatpush.msra.mxu0 0.0
  %705 = vmatpush.msra.mxu0 0.0
  %706 = vmatpush.msra.mxu0 0.0
  %707 = vmatpush.msra.mxu0 0.0
  %708 = vmatpush.msra.mxu0 0.0
  %709 = vmatpush.msra.mxu0 0.0
  %710 = vmatpush.msra.mxu0 0.0
  %711 = vmatpush.msra.mxu0 0.0
  %712 = vmatpush.msra.mxu0 0.0
  %713 = vmatpush.msra.mxu0 0.0
  %714 = vmatpush.msra.mxu0 %v495
  %715 = vmatpush.msra.mxu0 %v481
  %716 = vmatpush.msra.mxu0 %v467
  %717 = vmatpush.msra.mxu0 %v453
  %718 = vmatpush.msra.mxu0 %v439
  %719 = vmatmul.f32.gmra.mxu0 %v501
  %v720 = vpop.f32.mrf.mxu0
  %v721 = vadd.f32 0.0, %v720
  %722 = vdwg.mxu0
  %723 = vmatpush.msra.mxu0 0.0
  %724 = vmatpush.msra.mxu0 0.0
  %725 = vmatpush.msra.mxu0 0.0
  %726 = vmatpush.msra.mxu0 0.0
  %727 = vmatpush.msra.mxu0 0.0
  %728 = vmatpush.msra.mxu0 0.0
  %729 = vmatpush.msra.mxu0 0.0
  %730 = vmatpush.msra.mxu0 0.0
  %731 = vmatpush.msra.mxu0 0.0
  %732 = vmatpush.msra.mxu0 0.0
  %733 = vmatpush.msra.mxu0 0.0
  %734 = vmatpush.msra.mxu0 %v496
  %735 = vmatpush.msra.mxu0 %v482
  %736 = vmatpush.msra.mxu0 %v468
  %737 = vmatpush.msra.mxu0 %v454
  %738 = vmatpush.msra.mxu0 %v440
  %739 = vmatmul.f32.gmra.mxu0 %v501
  %v740 = vpop.f32.mrf.mxu0
  %v741 = vadd.f32 0.0, %v740
  %742 = vdwg.mxu0
  %743 = vmatpush.msra.mxu0 0.0
  %744 = vmatpush.msra.mxu0 0.0
  %745 = vmatpush.msra.mxu0 0.0
  %746 = vmatpush.msra.mxu0 0.0
  %747 = vmatpush.msra.mxu0 0.0
  %748 = vmatpush.msra.mxu0 0.0
  %749 = vmatpush.msra.mxu0 0.0
  %750 = vmatpush.msra.mxu0 0.0
  %751 = vmatpush.msra.mxu0 0.0
  %752 = vmatpush.msra.mxu0 0.0
  %753 = vmatpush.msra.mxu0 0.0
  %754 = vmatpush.msra.mxu0 %v497
  %755 = vmatpush.msra.mxu0 %v483
  %756 = vmatpush.msra.mxu0 %v469
  %757 = vmatpush.msra.mxu0 %v455
  %758 = vmatpush.msra.mxu0 %v441
  %759 = vmatmul.f32.gmra.mxu0 %v501
  %v760 = vpop.f32.mrf.mxu0
  %v761 = vadd.f32 0.0, %v760
  %762 = vdwg.mxu0
  %763 = vmatpush.msra.mxu0 0.0
  %764 = vmatpush.msra.mxu0 0.0
  %765 = vmatpush.msra.mxu0 0.0
  %766 = vmatpush.msra.mxu0 0.0
  %767 = vmatpush.msra.mxu0 0.0
  %768 = vmatpush.msra.mxu0 0.0
  %769 = vmatpush.msra.mxu0 0.0
  %770 = vmatpush.msra.mxu0 0.0
  %771 = vmatpush.msra.mxu0 0.0
  %772 = vmatpush.msra.mxu0 0.0
  %773 = vmatpush.msra.mxu0 0.0
  %774 = vmatpush.msra.mxu0 %v498
  %775 = vmatpush.msra.mxu0 %v484
  %776 = vmatpush.msra.mxu0 %v470
  %777 = vmatpush.msra.mxu0 %v456
  %778 = vmatpush.msra.mxu0 %v442
  %779 = vmatmul.f32.gmra.mxu0 %v501
  %v780 = vpop.f32.mrf.mxu0
  %v781 = vadd.f32 0.0, %v780
  %782 = vdwg.mxu0
  %783 = vst [vmem:[%s3] sm:$0xff] %v521
  %784 = vst [vmem:[%s3 + $0x8] sm:$0xff] %v541
  %785 = vst [vmem:[%s3 + $0x10] sm:$0xff] %v561
  %786 = vst [vmem:[%s3 + $0x18] sm:$0xff] %v581
  %787 = vst [vmem:[%s3 + $0x20] sm:$0xff] %v601
  %788 = vst [vmem:[%s3 + $0x28] sm:$0xff] %v621
  %789 = vst [vmem:[%s3 + $0x30] sm:$0xff] %v641
  %790 = vst [vmem:[%s3 + $0x38] sm:$0xff] %v661
  %791 = vst [vmem:[%s3 + $0x40] sm:$0xff] %v681
  %792 = vst [vmem:[%s3 + $0x48] sm:$0xff] %v701
  %793 = vst [vmem:[%s3 + $0x50] sm:$0xff] %v721
  %794 = vst [vmem:[%s3 + $0x58] sm:$0xff] %v741
  %795 = vst [vmem:[%s3 + $0x60] sm:$0xff] %v761
  %796 = vst [vmem:[%s3 + $0x68] sm:$0xff] %v781
  // Predicated region
  $region29: #{mlp_model_decoder_forward.1} parent=0 // pred_check
    _
  $region30: #{mlp_model_decoder_forward.1} parent=0 // pred_check_branch
    %798 = sbr.rel (0) target = $region32
  $region31: #{mlp_model_decoder_forward.1} parent=0 // pred_region
    _
  $region32: #{mlp_model_decoder_forward.1} parent=0 // pred_fallthru
    _
  // Predicated region
  $region33: #{mlp_model_decoder_forward.1} parent=0 // pred_check
    _
  $region34: #{mlp_model_decoder_forward.1} parent=0 // pred_check_branch
    %800 = sbr.rel (0) target = $region36
  $region35: #{mlp_model_decoder_forward.1} parent=0 // pred_region
    _
  $region36: #{mlp_model_decoder_forward.1} parent=0 // pred_fallthru
    _
  %801 = vsyncmov [#allocation3]
  %s802 = vpop.sfrf %801
  %p803 = scmp.eq.s32.totalorder %s802, 0
  %p804 = pneg %p803
  %806 = shalt.err (%p804)

</llo_original>
